<compile_context>
chip_gen: v6e
topology: v6e:2x2x1
jax: 0.10.0
libtpu: 0.0.40
codegen_flags: <defaults>
</compile_context>

<pallas_src>
import jax
import jax.numpy as jnp
from jax.experimental import pallas as pl
from jax.experimental.pallas import tpu as pltpu


_LANES = 128                           # vreg lane width
_MAX_LANE_TILE = 2048                  # lanes per block (multiple of 128)
_TARGET_BLOCK_BYTES = 2 * 1024 * 1024  # ~2 MiB per buffer (perf review: 1-2 MiB)


def _tlu_kernel(x_ref, tau_ref, o_ref):
    # x_ref / o_ref: (ROW_TILE, LANE_TILE) VMEM tile of the (N*C, H*W) view.
    # tau_ref:       (ROW_TILE, 1) per-row threshold; lane-broadcast by maximum.
    o_ref[...] = jnp.maximum(x_ref[...], tau_ref[...])


def tlu_forward(x: jax.Array, tau: jax.Array) -> jax.Array:
    """TLU forward: out = max(x, tau).  x: (N, C, H, W), tau: (1, C, 1, 1)."""
    N, C, H, W = x.shape
    NC = N * C
    HW = H * W
    itemsize = jnp.dtype(x.dtype).itemsize

    # Free reshape of the contiguous activation (no data movement).
    x2d = x.reshape(NC, HW)

    # Tiny per-row threshold (NC * itemsize bytes) so the kernel hot loop has
    # no scalar lookups.  Cast to the activation dtype (matches a dtype-matched
    # PyTorch module).
    tau2d = jnp.broadcast_to(tau.reshape(1, C), (N, C)).reshape(NC, 1).astype(x.dtype)

    # --- tile selection ------------------------------------------------------
    # Lane tile: a multiple of 128, capped; ragged HW tail is masked by Pallas.
    lane_tile = min(pl.cdiv(HW, _LANES) * _LANES, _MAX_LANE_TILE)
    # Row tile: ~_TARGET_BLOCK_BYTES per buffer; either the full NC (always
    # legal, even if NC < 8) or a multiple of 8 sublanes (ragged tail masked).
    target_rows = max(8, _TARGET_BLOCK_BYTES // (lane_tile * itemsize))
    if NC <= target_rows:
        row_tile = NC
    else:
        row_tile = (target_rows // 8) * 8

    grid = (pl.cdiv(NC, row_tile), pl.cdiv(HW, lane_tile))

    out2d = pl.pallas_call(
        _tlu_kernel,
        out_shape=jax.ShapeDtypeStruct((NC, HW), x.dtype),
        grid=grid,
        in_specs=[
            pl.BlockSpec((row_tile, lane_tile), lambda i, j: (i, j)),
            # tau block index is constant along the inner (lane-tile) axis, so
            # Pallas re-uses it without re-fetching per step.
            pl.BlockSpec((row_tile, 1), lambda i, j: (i, 0)),
        ],
        out_specs=pl.BlockSpec((row_tile, lane_tile), lambda i, j: (i, j)),
        compiler_params=pltpu.CompilerParams(
            # Elementwise, no cross-iteration state: both axes parallel
            # (lets Mosaic shard the grid across v7x's 2 TensorCores).
            dimension_semantics=("parallel", "parallel"),
        ),
        cost_estimate=pl.CostEstimate(
            flops=NC * HW,
            transcendentals=0,
            bytes_accessed=2 * NC * HW * itemsize,
        ),
        # NOTE: input_output_aliases={0: 0} would save the output allocation,
        # but when x is a non-donated jit parameter XLA inserts a defensive
        # copy (an extra HBM pass), so it is intentionally omitted here.
    )(x2d, tau2d)

    return out2d.reshape(N, C, H, W)


if __name__ == "__main__":
    key = jax.random.PRNGKey(0)
    N, C, H, W = 2, 4, 16, 16

    x = jax.random.normal(key, (N, C, H, W), dtype=jnp.float32)
    # Deterministic parameter init: tau = -1 (matches reset_parameters()).
    tau = -jnp.ones((1, C, 1, 1), dtype=jnp.float32)

    tlu_jit = jax.jit(tlu_forward)
    out = jax.block_until_ready(tlu_jit(x, tau))

    ref = jnp.maximum(x, tau)
    assert out.shape == (N, C, H, W)
    assert jnp.allclose(out, ref), "TLU kernel mismatch vs reference"

    # Extra check with a distinct per-channel threshold to exercise the
    # per-channel broadcast path.
    tau2 = jnp.linspace(-1.5, 0.5, C, dtype=jnp.float32).reshape(1, C, 1, 1)
    out2 = jax.block_until_ready(tlu_jit(x, tau2))
    assert jnp.allclose(out2, jnp.maximum(x, tau2)), "TLU per-channel mismatch"

    print("KERNEL_OK")
</pallas_src>

<mosaic_0001>
module attributes {stable_mosaic.version = 11 : i64} {
  func.func @_tlu_kernel(%arg0: i32, %arg1: i32, %arg2: memref<8x256xf32, #tpu.memory_space<vmem>>, %arg3: memref<8x1xf32, #tpu.memory_space<vmem>>, %arg4: memref<8x256xf32, #tpu.memory_space<vmem>>) attributes {dimension_semantics = [#tpu.dimension_semantics<parallel>, #tpu.dimension_semantics<parallel>], iteration_bounds = array<i64: 1, 1>, scalar_prefetch = 0 : i64, scratch_operands = 0 : i64, tpu.core_type = #tpu.core_type<tc>, window_params = [{transform_indices = @transform_0, window_bounds = array<i64: 8, 256>}, {transform_indices = @transform_1, window_bounds = array<i64: 8, 1>}, {transform_indices = @transform_2, window_bounds = array<i64: 8, 256>}]} {
    %c0 = arith.constant 0 : index
    %c0_0 = arith.constant 0 : index
    %0 = vector.load %arg2[%c0, %c0_0] : memref<8x256xf32, #tpu.memory_space<vmem>>, vector<8x256xf32>
    %c0_1 = arith.constant 0 : index
    %c0_2 = arith.constant 0 : index
    %1 = vector.load %arg3[%c0_1, %c0_2] : memref<8x1xf32, #tpu.memory_space<vmem>>, vector<8x1xf32>
    %2 = vector.broadcast %1 : vector<8x1xf32> to vector<8x256xf32>
    %3 = arith.maximumf %0, %2 : vector<8x256xf32>
    %c0_3 = arith.constant 0 : index
    %c0_4 = arith.constant 0 : index
    %4 = vector.load %arg4[%c0_3, %c0_4] : memref<8x256xf32, #tpu.memory_space<vmem>>, vector<8x256xf32>
    tpu.vector_store %arg4[%c0_3, %c0_4], %3 {strides = array<i32>} : memref<8x256xf32, #tpu.memory_space<vmem>>, vector<8x256xf32>,
    return
  }
  func.func @transform_0(%arg0: i32, %arg1: i32) -> (i32, i32) {
    %c0_i32 = arith.constant 0 : i32
    return %arg0, %arg1 : i32, i32
  }
  func.func @transform_1(%arg0: i32, %arg1: i32) -> (i32, i32) {
    %c0_i32 = arith.constant 0 : i32
    %c0_i32_0 = arith.constant 0 : i32
    return %arg0, %c0_i32 : i32, i32
  }
  func.func @transform_2(%arg0: i32, %arg1: i32) -> (i32, i32) {
    %c0_i32 = arith.constant 0 : i32
    return %arg0, %arg1 : i32, i32
  }
}

</mosaic_0001>

<llo_original>
// kernel: tlu_forward.1
$region0: #{tlu_forward.1}
  #allocation0 [shape = 'u32[]', space=smem, size = 0x4, offset = 0x4, fixed_abs, tag = 'smem constant byte address 0x4 - core index']
  #allocation1 [shape = 'u32[144,128]{1,0:T(1,128)}', space=vmem, size = 0x12000, scoped, tag = 'internal scratch']
  %s0 = inlined_call_operand.vmem [shape: f32[8,256], index: 0, kind: input, shape index: {}]
  %s1 = inlined_call_operand.vmem [shape: f32[8,1], index: 1, kind: input, shape index: {}]
  %s2 = inlined_call_operand.vmem [shape: f32[8,256], index: 2, kind: output, shape index: {}]
  %s3 = sld [smem:[#allocation0]]
  $region18: #{tlu_forward.1} parent=0
    _
  %s5 = ssub.s32 1, %s3
  %s6 = scalar_select 0, %s5, %s3
  // Predicated region
  $region2: #{tlu_forward.1} parent=0 // pred_check
    _
  $region3: #{tlu_forward.1} parent=0 // pred_check_branch
    %8 = sbr.rel (0) target = $region5
  $region4: #{tlu_forward.1} parent=0 // pred_region
    _
  $region5: #{tlu_forward.1} parent=0 // pred_fallthru
    _
  // Predicated region
  $region6: #{tlu_forward.1} parent=0 // pred_check
    _
  $region7: #{tlu_forward.1} parent=0 // pred_check_branch
    %10 = sbr.rel (0) target = $region9
  $region8: #{tlu_forward.1} parent=0 // pred_region
    _
  $region9: #{tlu_forward.1} parent=0 // pred_fallthru
    _
  %v11 = vld [vmem:[%s0] sm:$0xff]
  %v12 = vld [vmem:[%s0 + $0x8] sm:$0xff]
  %v13 = vld [vmem:[%s1] sm:$0xff]
  %15 = vset.pattern.permute.xlu0 0
  %16 = vperm.xlu0 %15, %v13
  %v17 = vpop.permute.xlu0 %16
  %v19 = vmax.f32 %v11, %v17
  %v20 = vmax.f32 %v12, %v17
  %21 = vst [vmem:[%s2] sm:$0xff] %v19
  %22 = vst [vmem:[%s2 + $0x8] sm:$0xff] %v20
  // Predicated region
  $region10: #{tlu_forward.1} parent=0 // pred_check
    _
  $region11: #{tlu_forward.1} parent=0 // pred_check_branch
    %24 = sbr.rel (0) target = $region13
  $region12: #{tlu_forward.1} parent=0 // pred_region
    _
  $region13: #{tlu_forward.1} parent=0 // pred_fallthru
    _
  // Predicated region
  $region14: #{tlu_forward.1} parent=0 // pred_check
    _
  $region15: #{tlu_forward.1} parent=0 // pred_check_branch
    %26 = sbr.rel (0) target = $region17
  $region16: #{tlu_forward.1} parent=0 // pred_region
    _
  $region17: #{tlu_forward.1} parent=0 // pred_fallthru
    _

</llo_original>
